<compile_context>
chip_gen: v5e
topology: v5e:2x2
jax: 0.10.0
libtpu: 0.0.40
codegen_flags: <defaults>
</compile_context>

<pallas_src>
import math

import jax
import jax.numpy as jnp
from jax.experimental import pallas as pl
from jax.experimental.pallas import tpu as pltpu


def _multiplex_gnnp_kernel(x_ref, ac_ref, ap_ref, wc_ref, wp_ref,
                           watt_ref, woutt_ref, bias_ref, o_ref):
    """Fused 2-branch GraphConvolution + attention mix + ReLU + linear head.

    Processes one block of node rows per grid step; all weights and the full
    (small) feature matrix x stay VMEM-resident.
    """
    x = x_ref[...]                                                      # [N, C]

    # Branch feature maps m = x @ W (tiny, recomputed per row block).
    mc = jnp.dot(x, wc_ref[...], preferred_element_type=jnp.float32)   # [N, H]
    mp = jnp.dot(x, wp_ref[...], preferred_element_type=jnp.float32)   # [N, H]

    # Second-stage MXU inputs match the adjacency dtype (bf16 path on v6e/v7x).
    cdt = ac_ref.dtype
    xc = jnp.dot(ac_ref[...], mc.astype(cdt),
                 preferred_element_type=jnp.float32)                   # [tm, H]
    xp = jnp.dot(ap_ref[...], mp.astype(cdt),
                 preferred_element_type=jnp.float32)                   # [tm, H]

    # Attention logits:  s_c[i] = w_chem_t    . [xc[i]; xp[i]]
    #                    s_p[i] = w_protein_t . [xc[i]; xp[i]]
    watt = watt_ref[...].astype(jnp.float32)                           # [4, H]
    wct_c, wct_p = watt[0:1, :], watt[1:2, :]
    wpt_c, wpt_p = watt[2:3, :], watt[3:4, :]
    s_c = jnp.sum(xc * wct_c + xp * wct_p, axis=-1, keepdims=True)     # [tm, 1]
    s_p = jnp.sum(xc * wpt_c + xp * wpt_p, axis=-1, keepdims=True)     # [tm, 1]

    # Per-node 2-way softmax over {chem, protein}.
    m = jnp.maximum(s_c, s_p)
    e_c = jnp.exp(s_c - m)
    e_p = jnp.exp(s_p - m)
    inv = 1.0 / (e_c + e_p)
    a_c = e_c * inv
    a_p = e_p * inv

    h = jnp.maximum(a_c * xc + a_p * xp, 0.0)                          # [tm, H]

    out = jnp.dot(h.astype(woutt_ref.dtype), woutt_ref[...],
                  preferred_element_type=jnp.float32)                  # [tm, C]
    out = out + bias_ref[...].astype(jnp.float32)
    o_ref[...] = out.astype(o_ref.dtype)


def multiplex_gnnp_forward(x, adj_chem, adj_protein, w_chem, w_protein,
                           w_chem_t, w_protein_t, w_out, b_out, *, tm=None):
    """MultiplexGNNp.forward in eval mode via one fused Pallas kernel.

    x            : [N, num_class]   (GNNp consumes per-node class distributions)
    adj_*        : [N, N]           dense (normalized) adjacencies
    w_chem/prot  : [num_class, hidden_dim]
    w_*_t        : [1, 2*hidden_dim]
    w_out        : [num_class, hidden_dim],  b_out : [num_class]
    """
    N, C = x.shape
    H = w_chem.shape[1]
    assert adj_chem.shape == (N, N) and adj_protein.shape == (N, N)

    # Row tile: one step for small graphs, 256-row blocks for large ones.
    if tm is None:
        tm = N if N <= 256 else 256
    n_blk = pl.cdiv(N, tm)
    n_pad = n_blk * tm
    if n_pad != N:
        pad = n_pad - N
        adj_chem = jnp.pad(adj_chem, ((0, pad), (0, 0)))
        adj_protein = jnp.pad(adj_protein, ((0, pad), (0, 0)))

    # Pre-split attention weights into chem/protein halves -> rows of a [4, H]:
    #   [w_chem_t[:H], w_chem_t[H:], w_protein_t[:H], w_protein_t[H:]]
    w_att = jnp.concatenate(
        [w_chem_t[:, :H], w_chem_t[:, H:], w_protein_t[:, :H], w_protein_t[:, H:]],
        axis=0)
    w_out_t = w_out.T                      # [H, C]  so F.linear is h @ w_out_t + b
    bias = b_out.reshape(1, C)

    out = pl.pallas_call(
        _multiplex_gnnp_kernel,
        out_shape=jax.ShapeDtypeStruct((n_pad, C), x.dtype),
        grid_spec=pltpu.PrefetchScalarGridSpec(
            num_scalar_prefetch=0,
            grid=(n_blk,),
            in_specs=[
                pl.BlockSpec((N, C), lambda i: (0, 0)),    # x (full, VMEM-resident)
                pl.BlockSpec((tm, N), lambda i: (i, 0)),   # adj_chem row block
                pl.BlockSpec((tm, N), lambda i: (i, 0)),   # adj_protein row block
                pl.BlockSpec((C, H), lambda i: (0, 0)),    # W_chem
                pl.BlockSpec((C, H), lambda i: (0, 0)),    # W_protein
                pl.BlockSpec((4, H), lambda i: (0, 0)),    # attention weights (split)
                pl.BlockSpec((H, C), lambda i: (0, 0)),    # W_out.T
                pl.BlockSpec((1, C), lambda i: (0, 0)),    # bias
            ],
            out_specs=pl.BlockSpec((tm, C), lambda i: (i, 0)),
        ),
        compiler_params=pltpu.CompilerParams(
            dimension_semantics=("parallel",),
        ),
    )(x, adj_chem, adj_protein, w_chem, w_protein, w_att, w_out_t, bias)
    return out[:N]


def init_multiplex_gnnp_params(key, num_class, hidden_dim, dtype=jnp.float32):
    """Mirror MultiplexGNNp.reset(): uniform(-stdv, stdv) initializers."""
    k1, k2, k3, k4, k5, k6 = jax.random.split(key, 6)
    s_gc = 1.0 / math.sqrt(hidden_dim)            # GraphConvolution.reset_parameters
    w_chem = jax.random.uniform(k1, (num_class, hidden_dim), dtype, -s_gc, s_gc)
    w_protein = jax.random.uniform(k2, (num_class, hidden_dim), dtype, -s_gc, s_gc)
    s_att = 1.0 / math.sqrt(2 * hidden_dim)
    w_chem_t = jax.random.uniform(k3, (1, 2 * hidden_dim), dtype, -s_att, s_att)
    w_protein_t = jax.random.uniform(k4, (1, 2 * hidden_dim), dtype, -s_att, s_att)
    s_out = 1.0 / math.sqrt(num_class)
    w_out = jax.random.uniform(k5, (num_class, hidden_dim), dtype, -s_out, s_out)
    b_out = jax.random.uniform(k6, (num_class,), dtype, -s_out, s_out)
    return w_chem, w_protein, w_chem_t, w_protein_t, w_out, b_out


def multiplex_gnnp_ref(x, ac, ap, wc, wp, wct, wpt, w_out, b_out):
    """Pure-JAX reference mirroring the PyTorch forward (eval mode)."""
    xc = ac @ (x @ wc)
    xp = ap @ (x @ wp)
    c_n = jnp.concatenate([xc.T, xp.T], axis=0)                 # [2H, N]
    logits = jnp.concatenate([wct @ c_n, wpt @ c_n], axis=0)    # [2, N]
    attn = jax.nn.softmax(logits, axis=0)
    h = jnp.maximum(attn[0][:, None] * xc + attn[1][:, None] * xp, 0.0)
    return h @ w_out.T + b_out


if __name__ == "__main__":
    N_NODES = 64
    NUM_CLASS = 16
    HIDDEN_DIM = 32

    key = jax.random.PRNGKey(0)
    kx, kac, kap, kw = jax.random.split(key, 4)

    # GNNp consumes per-node class distributions.
    x = jax.nn.softmax(
        jax.random.normal(kx, (N_NODES, NUM_CLASS), jnp.float32), axis=-1)

    def make_adj(k):
        a = (jax.random.uniform(k, (N_NODES, N_NODES)) < 0.1).astype(jnp.float32)
        a = jnp.maximum(a, a.T) + jnp.eye(N_NODES, dtype=jnp.float32)
        return a / jnp.sum(a, axis=1, keepdims=True)

    adj_chem = make_adj(kac)
    adj_protein = make_adj(kap)

    (w_chem, w_protein, w_chem_t, w_protein_t,
     w_out, b_out) = init_multiplex_gnnp_params(kw, NUM_CLASS, HIDDEN_DIM)

    fwd = jax.jit(multiplex_gnnp_forward)
    out = fwd(x, adj_chem, adj_protein, w_chem, w_protein,
              w_chem_t, w_protein_t, w_out, b_out)
    jax.block_until_ready(out)

    ref = multiplex_gnnp_ref(x, adj_chem, adj_protein, w_chem, w_protein,
                             w_chem_t, w_protein_t, w_out, b_out)
    assert out.shape == (N_NODES, NUM_CLASS)
    assert jnp.allclose(out, ref, atol=2e-3, rtol=2e-3), \
        float(jnp.max(jnp.abs(out - ref)))

    print("KERNEL_OK")
</pallas_src>

<mosaic_0001>
module attributes {stable_mosaic.version = 11 : i64} {
  func.func @_multiplex_gnnp_kernel(%arg0: i32, %arg1: memref<64x16xf32, #tpu.memory_space<vmem>>, %arg2: memref<64x64xf32, #tpu.memory_space<vmem>>, %arg3: memref<64x64xf32, #tpu.memory_space<vmem>>, %arg4: memref<16x32xf32, #tpu.memory_space<vmem>>, %arg5: memref<16x32xf32, #tpu.memory_space<vmem>>, %arg6: memref<4x32xf32, #tpu.memory_space<vmem>>, %arg7: memref<32x16xf32, #tpu.memory_space<vmem>>, %arg8: memref<1x16xf32, #tpu.memory_space<vmem>>, %arg9: memref<64x16xf32, #tpu.memory_space<vmem>>) attributes {dimension_semantics = [#tpu.dimension_semantics<parallel>], iteration_bounds = array<i64: 1>, scalar_prefetch = 0 : i64, scratch_operands = 0 : i64, tpu.core_type = #tpu.core_type<tc>, window_params = [{pipeline_mode = #tpu.pipeline_mode<synchronous>, transform_indices = @transform_0, window_bounds = array<i64: 64, 16>}, {transform_indices = @transform_1, window_bounds = array<i64: 64, 64>}, {transform_indices = @transform_2, window_bounds = array<i64: 64, 64>}, {pipeline_mode = #tpu.pipeline_mode<synchronous>, transform_indices = @transform_3, window_bounds = array<i64: 16, 32>}, {pipeline_mode = #tpu.pipeline_mode<synchronous>, transform_indices = @transform_4, window_bounds = array<i64: 16, 32>}, {pipeline_mode = #tpu.pipeline_mode<synchronous>, transform_indices = @transform_5, window_bounds = array<i64: 4, 32>}, {pipeline_mode = #tpu.pipeline_mode<synchronous>, transform_indices = @transform_6, window_bounds = array<i64: 32, 16>}, {pipeline_mode = #tpu.pipeline_mode<synchronous>, transform_indices = @transform_7, window_bounds = array<i64: 1, 16>}, {transform_indices = @transform_8, window_bounds = array<i64: 64, 16>}]} {
    %c0 = arith.constant 0 : index
    %c0_0 = arith.constant 0 : index
    %0 = vector.load %arg1[%c0, %c0_0] : memref<64x16xf32, #tpu.memory_space<vmem>>, vector<64x16xf32>
    %c0_1 = arith.constant 0 : index
    %c0_2 = arith.constant 0 : index
    %1 = vector.load %arg4[%c0_1, %c0_2] : memref<16x32xf32, #tpu.memory_space<vmem>>, vector<16x32xf32>
    %cst = arith.constant dense<0.000000e+00> : vector<64x32xf32>
    %2 = tpu.matmul %0, %1, %cst {dimension_numbers = #tpu.dot_dimension_numbers<[1], [0], [0], [1], [0, 0, 1, 1], [], []>} : vector<64x16xf32>, vector<16x32xf32>, vector<64x32xf32> -> vector<64x32xf32>
    %c0_3 = arith.constant 0 : index
    %c0_4 = arith.constant 0 : index
    %3 = vector.load %arg5[%c0_3, %c0_4] : memref<16x32xf32, #tpu.memory_space<vmem>>, vector<16x32xf32>
    %cst_5 = arith.constant dense<0.000000e+00> : vector<64x32xf32>
    %4 = tpu.matmul %0, %3, %cst_5 {dimension_numbers = #tpu.dot_dimension_numbers<[1], [0], [0], [1], [0, 0, 1, 1], [], []>} : vector<64x16xf32>, vector<16x32xf32>, vector<64x32xf32> -> vector<64x32xf32>
    %c0_6 = arith.constant 0 : index
    %c0_7 = arith.constant 0 : index
    %5 = vector.load %arg2[%c0_6, %c0_7] : memref<64x64xf32, #tpu.memory_space<vmem>>, vector<64x64xf32>
    %cst_8 = arith.constant dense<0.000000e+00> : vector<64x32xf32>
    %6 = tpu.matmul %5, %2, %cst_8 {dimension_numbers = #tpu.dot_dimension_numbers<[1], [0], [0], [1], [0, 0, 1, 1], [], []>} : vector<64x64xf32>, vector<64x32xf32>, vector<64x32xf32> -> vector<64x32xf32>
    %c0_9 = arith.constant 0 : index
    %c0_10 = arith.constant 0 : index
    %7 = vector.load %arg3[%c0_9, %c0_10] : memref<64x64xf32, #tpu.memory_space<vmem>>, vector<64x64xf32>
    %cst_11 = arith.constant dense<0.000000e+00> : vector<64x32xf32>
    %8 = tpu.matmul %7, %4, %cst_11 {dimension_numbers = #tpu.dot_dimension_numbers<[1], [0], [0], [1], [0, 0, 1, 1], [], []>} : vector<64x64xf32>, vector<64x32xf32>, vector<64x32xf32> -> vector<64x32xf32>
    %c0_12 = arith.constant 0 : index
    %c0_13 = arith.constant 0 : index
    %9 = vector.load %arg6[%c0_12, %c0_13] : memref<4x32xf32, #tpu.memory_space<vmem>>, vector<4x32xf32>
    %10 = vector.extract_strided_slice %9 {offsets = [0, 0], sizes = [1, 32], strides = [1, 1]} : vector<4x32xf32> to vector<1x32xf32>
    %11 = vector.extract_strided_slice %9 {offsets = [1, 0], sizes = [1, 32], strides = [1, 1]} : vector<4x32xf32> to vector<1x32xf32>
    %12 = vector.extract_strided_slice %9 {offsets = [2, 0], sizes = [1, 32], strides = [1, 1]} : vector<4x32xf32> to vector<1x32xf32>
    %13 = vector.extract_strided_slice %9 {offsets = [3, 0], sizes = [1, 32], strides = [1, 1]} : vector<4x32xf32> to vector<1x32xf32>
    %14 = vector.broadcast %10 : vector<1x32xf32> to vector<64x32xf32>
    %15 = arith.mulf %6, %14 : vector<64x32xf32>
    %16 = vector.broadcast %11 : vector<1x32xf32> to vector<64x32xf32>
    %17 = arith.mulf %8, %16 : vector<64x32xf32>
    %18 = arith.addf %15, %17 : vector<64x32xf32>
    %cst_14 = arith.constant dense<0.000000e+00> : vector<64xf32>
    %19 = vector.multi_reduction <add>, %18, %cst_14 [1] : vector<64x32xf32> to vector<64xf32>
    %20 = vector.shape_cast %19 : vector<64xf32> to vector<64x1xf32>
    %21 = vector.broadcast %12 : vector<1x32xf32> to vector<64x32xf32>
    %22 = arith.mulf %6, %21 : vector<64x32xf32>
    %23 = vector.broadcast %13 : vector<1x32xf32> to vector<64x32xf32>
    %24 = arith.mulf %8, %23 : vector<64x32xf32>
    %25 = arith.addf %22, %24 : vector<64x32xf32>
    %cst_15 = arith.constant dense<0.000000e+00> : vector<64xf32>
    %26 = vector.multi_reduction <add>, %25, %cst_15 [1] : vector<64x32xf32> to vector<64xf32>
    %27 = vector.shape_cast %26 : vector<64xf32> to vector<64x1xf32>
    %28 = arith.maximumf %20, %27 : vector<64x1xf32>
    %29 = arith.subf %20, %28 : vector<64x1xf32>
    %30 = math.exp %29 : vector<64x1xf32>
    %31 = arith.subf %27, %28 : vector<64x1xf32>
    %32 = math.exp %31 : vector<64x1xf32>
    %33 = arith.addf %30, %32 : vector<64x1xf32>
    %cst_16 = arith.constant 1.000000e+00 : f32
    %34 = vector.broadcast %cst_16 : f32 to vector<64x1xf32>
    %35 = arith.divf %34, %33 : vector<64x1xf32>
    %36 = arith.mulf %30, %35 : vector<64x1xf32>
    %37 = arith.mulf %32, %35 : vector<64x1xf32>
    %38 = vector.broadcast %36 : vector<64x1xf32> to vector<64x32xf32>
    %39 = arith.mulf %38, %6 : vector<64x32xf32>
    %40 = vector.broadcast %37 : vector<64x1xf32> to vector<64x32xf32>
    %41 = arith.mulf %40, %8 : vector<64x32xf32>
    %42 = arith.addf %39, %41 : vector<64x32xf32>
    %cst_17 = arith.constant 0.000000e+00 : f32
    %43 = vector.broadcast %cst_17 : f32 to vector<64x32xf32>
    %44 = arith.maximumf %42, %43 : vector<64x32xf32>
    %c0_18 = arith.constant 0 : index
    %c0_19 = arith.constant 0 : index
    %45 = vector.load %arg7[%c0_18, %c0_19] : memref<32x16xf32, #tpu.memory_space<vmem>>, vector<32x16xf32>
    %cst_20 = arith.constant dense<0.000000e+00> : vector<64x16xf32>
    %46 = tpu.matmul %44, %45, %cst_20 {dimension_numbers = #tpu.dot_dimension_numbers<[1], [0], [0], [1], [0, 0, 1, 1], [], []>} : vector<64x32xf32>, vector<32x16xf32>, vector<64x16xf32> -> vector<64x16xf32>
    %c0_21 = arith.constant 0 : index
    %c0_22 = arith.constant 0 : index
    %47 = vector.load %arg8[%c0_21, %c0_22] : memref<1x16xf32, #tpu.memory_space<vmem>>, vector<1x16xf32>
    %48 = vector.broadcast %47 : vector<1x16xf32> to vector<64x16xf32>
    %49 = arith.addf %46, %48 : vector<64x16xf32>
    %c0_23 = arith.constant 0 : index
    %c0_24 = arith.constant 0 : index
    %50 = vector.load %arg9[%c0_23, %c0_24] : memref<64x16xf32, #tpu.memory_space<vmem>>, vector<64x16xf32>
    tpu.vector_store %arg9[%c0_23, %c0_24], %49 {strides = array<i32>} : memref<64x16xf32, #tpu.memory_space<vmem>>, vector<64x16xf32>,
    return
  }
  func.func @transform_0(%arg0: i32) -> (i32, i32) {
    %c0_i32 = arith.constant 0 : i32
    %c0_i32_0 = arith.constant 0 : i32
    %c0_i32_1 = arith.constant 0 : i32
    return %c0_i32, %c0_i32_0 : i32, i32
  }
  func.func @transform_1(%arg0: i32) -> (i32, i32) {
    %c0_i32 = arith.constant 0 : i32
    %c0_i32_0 = arith.constant 0 : i32
    return %arg0, %c0_i32 : i32, i32
  }
  func.func @transform_2(%arg0: i32) -> (i32, i32) {
    %c0_i32 = arith.constant 0 : i32
    %c0_i32_0 = arith.constant 0 : i32
    return %arg0, %c0_i32 : i32, i32
  }
  func.func @transform_3(%arg0: i32) -> (i32, i32) {
    %c0_i32 = arith.constant 0 : i32
    %c0_i32_0 = arith.constant 0 : i32
    %c0_i32_1 = arith.constant 0 : i32
    return %c0_i32, %c0_i32_0 : i32, i32
  }
  func.func @transform_4(%arg0: i32) -> (i32, i32) {
    %c0_i32 = arith.constant 0 : i32
    %c0_i32_0 = arith.constant 0 : i32
    %c0_i32_1 = arith.constant 0 : i32
    return %c0_i32, %c0_i32_0 : i32, i32
  }
  func.func @transform_5(%arg0: i32) -> (i32, i32) {
    %c0_i32 = arith.constant 0 : i32
    %c0_i32_0 = arith.constant 0 : i32
    %c0_i32_1 = arith.constant 0 : i32
    return %c0_i32, %c0_i32_0 : i32, i32
  }
  func.func @transform_6(%arg0: i32) -> (i32, i32) {
    %c0_i32 = arith.constant 0 : i32
    %c0_i32_0 = arith.constant 0 : i32
    %c0_i32_1 = arith.constant 0 : i32
    return %c0_i32, %c0_i32_0 : i32, i32
  }
  func.func @transform_7(%arg0: i32) -> (i32, i32) {
    %c0_i32 = arith.constant 0 : i32
    %c0_i32_0 = arith.constant 0 : i32
    %c0_i32_1 = arith.constant 0 : i32
    return %c0_i32, %c0_i32_0 : i32, i32
  }
  func.func @transform_8(%arg0: i32) -> (i32, i32) {
    %c0_i32 = arith.constant 0 : i32
    %c0_i32_0 = arith.constant 0 : i32
    return %arg0, %c0_i32 : i32, i32
  }
}

</mosaic_0001>

<llo_original>
// kernel: multiplex_gnnp_forward.1
$region0: #{multiplex_gnnp_forward.1}
  #allocation0 [shape = 'u32[]', space=smem, size = 0x4, offset = 0x4, fixed_abs, tag = 'smem constant byte address 0x4 - core index']
  #allocation1 [shape = 'u32[72,128]{1,0:T(1,128)}', space=vmem, size = 0x9000, scoped, tag = 'internal scratch']
  %s0 = inlined_call_operand.vmem [shape: f32[64,16], index: 0, kind: input, shape index: {}]
  %s1 = inlined_call_operand.vmem [shape: f32[64,64], index: 1, kind: input, shape index: {}]
  %s2 = inlined_call_operand.hbm [shape: f32[64,64], index: 2, kind: input, shape index: {}]
  %s3 = inlined_call_operand.vmem [shape: f32[16,32], index: 3, kind: input, shape index: {}]
  %s4 = inlined_call_operand.vmem [shape: f32[16,32], index: 4, kind: input, shape index: {}]
  %s5 = inlined_call_operand.vmem [shape: f32[4,32], index: 5, kind: input, shape index: {}]
  %s6 = inlined_call_operand.vmem [shape: f32[32,16], index: 6, kind: input, shape index: {}]
  %s7 = inlined_call_operand.vmem [shape: f32[1,16], index: 7, kind: input, shape index: {}]
  %s8 = inlined_call_operand.vmem [shape: f32[64,16], index: 8, kind: output, shape index: {}]
  %s9 = sld [smem:[#allocation0]]
  $region46: #{multiplex_gnnp_forward.1} parent=0
    _
  %s11 = ssub.s32 1, %s9
  %s12 = scalar_select 0, %s11, %s9
  $region1: #{multiplex_gnnp_forward.1} parent=0
    #allocation2 [shape = 'u8[32768]{0}', space=vmem, size = 0x8000, scoped, tag = 'input window, operand 2, single buffered']
    #allocation3 [shape = 's32[1]{0}', space=sflag, size = 0x4, scoped, tag = 'scoped memory for multiplex_gnnp_forward.1']
    %13 = vsyncpa [#allocation3], 0
    // Predicated region
    $region2: #{multiplex_gnnp_forward.1} parent=1 // pred_check
      _
    $region3: #{multiplex_gnnp_forward.1} parent=1 // pred_check_branch
      %15 = sbr.rel (0) target = $region5
    $region4: #{multiplex_gnnp_forward.1} parent=1 // pred_region
      _
    $region5: #{multiplex_gnnp_forward.1} parent=1 // pred_fallthru
      _
    // Predicated region
    $region6: #{multiplex_gnnp_forward.1} parent=1 // pred_check
      _
    $region7: #{multiplex_gnnp_forward.1} parent=1 // pred_check_branch
      %17 = sbr.rel (0) target = $region9
    $region8: #{multiplex_gnnp_forward.1} parent=1 // pred_region
      _
    $region9: #{multiplex_gnnp_forward.1} parent=1 // pred_fallthru
      _
    // Predicated region
    $region10: #{multiplex_gnnp_forward.1} parent=1 // pred_check
      _
    $region11: #{multiplex_gnnp_forward.1} parent=1 // pred_check_branch
      %19 = sbr.rel (0) target = $region13
    $region12: #{multiplex_gnnp_forward.1} parent=1 // pred_region
      %21 = vsyncadd [#allocation3], 0
      %s22 = sshll.u32 %s2, 4
      %s23 = int_to_ptr.hbm [resolvable:$true] %s22
      %s24 = sshll.u32 [#allocation2], 4
      %s25 = int_to_ptr.vmem [resolvable:$true] %s24
      %30 = dma.hbm_to_vmem [thread:$0]  %s23, 1024, %s25, [#allocation3], 128, 128, 8
    $region13: #{multiplex_gnnp_forward.1} parent=1 // pred_fallthru
      _
    // Predicated region
    $region14: #{multiplex_gnnp_forward.1} parent=1 // pred_check
      _
    $region15: #{multiplex_gnnp_forward.1} parent=1 // pred_check_branch
      %32 = sbr.rel (0) target = $region17
    $region16: #{multiplex_gnnp_forward.1} parent=1 // pred_region
      _
    $region17: #{multiplex_gnnp_forward.1} parent=1 // pred_fallthru
      _
    // Predicated region
    $region18: #{multiplex_gnnp_forward.1} parent=1 // pred_check
      _
    $region19: #{multiplex_gnnp_forward.1} parent=1 // pred_check_branch
      %34 = sbr.rel (0) target = $region21
    $region20: #{multiplex_gnnp_forward.1} parent=1 // pred_region
      _
    $region21: #{multiplex_gnnp_forward.1} parent=1 // pred_fallthru
      _
    // Predicated region
    $region22: #{multiplex_gnnp_forward.1} parent=1 // pred_check
      _
    $region23: #{multiplex_gnnp_forward.1} parent=1 // pred_check_branch
      %36 = sbr.rel (0) target = $region25
    $region24: #{multiplex_gnnp_forward.1} parent=1 // pred_region
      _
    $region25: #{multiplex_gnnp_forward.1} parent=1 // pred_fallthru
      _
    // Predicated region
    $region26: #{multiplex_gnnp_forward.1} parent=1 // pred_check
      _
    $region27: #{multiplex_gnnp_forward.1} parent=1 // pred_check_branch
      %38 = sbr.rel (0) target = $region29
    $region28: #{multiplex_gnnp_forward.1} parent=1 // pred_region
      _
    $region29: #{multiplex_gnnp_forward.1} parent=1 // pred_fallthru
      _
    // Predicated region
    $region30: #{multiplex_gnnp_forward.1} parent=1 // pred_check
      _
    $region31: #{multiplex_gnnp_forward.1} parent=1 // pred_check_branch
      %40 = sbr.rel (0) target = $region33
    $region32: #{multiplex_gnnp_forward.1} parent=1 // pred_region
      _
    $region33: #{multiplex_gnnp_forward.1} parent=1 // pred_fallthru
      _
    // Predicated region
    $region34: #{multiplex_gnnp_forward.1} parent=1 // pred_check
      _
    $region35: #{multiplex_gnnp_forward.1} parent=1 // pred_check_branch
      %42 = sbr.rel (0) target = $region37
    $region36: #{multiplex_gnnp_forward.1} parent=1 // pred_region
      %44 = dma.done [#allocation3], 1024
    $region37: #{multiplex_gnnp_forward.1} parent=1 // pred_fallthru
      _
    %v45 = vld [vmem:[%s0] sm:$0xff]
    %v46 = vld [vmem:[%s0 + $0x8] sm:$0xff]
    %v47 = vld [vmem:[%s0 + $0x10] sm:$0xff]
    %v48 = vld [vmem:[%s0 + $0x18] sm:$0xff]
    %v49 = vld [vmem:[%s0 + $0x20] sm:$0xff]
    %v50 = vld [vmem:[%s0 + $0x28] sm:$0xff]
    %v51 = vld [vmem:[%s0 + $0x30] sm:$0xff]
    %v52 = vld [vmem:[%s0 + $0x38] sm:$0xff]
    %v53 = vld [vmem:[%s3] sm:$0xff]
    %v54 = vld [vmem:[%s3 + $0x8] sm:$0xff]
    %vm55 = vcmask 130048
    %v57 = vsel %vm55, %v45, 0
    %v60 = vsel %vm55, %v46, 0
    %v63 = vsel %vm55, %v47, 0
    %v66 = vsel %vm55, %v48, 0
    %v69 = vsel %vm55, %v49, 0
    %v72 = vsel %vm55, %v50, 0
    %v75 = vsel %vm55, %v51, 0
    %v78 = vsel %vm55, %v52, 0
    %80 = vmatpush.msra.mxu0 0.0
    %81 = vmatpush.msra.mxu0 0.0
    %82 = vmatpush.msra.mxu0 0.0
    %83 = vmatpush.msra.mxu0 0.0
    %84 = vmatpush.msra.mxu0 0.0
    %85 = vmatpush.msra.mxu0 0.0
    %86 = vmatpush.msra.mxu0 0.0
    %87 = vmatpush.msra.mxu0 0.0
    %88 = vmatpush.msra.mxu0 0.0
    %89 = vmatpush.msra.mxu0 0.0
    %90 = vmatpush.msra.mxu0 0.0
    %91 = vmatpush.msra.mxu0 0.0
    %92 = vmatpush.msra.mxu0 0.0
    %93 = vmatpush.msra.mxu0 0.0
    %94 = vmatpush.msra.mxu0 %v54
    %95 = vmatpush.msra.mxu0 %v53
    %96 = vmatmul.f32.gmra.mxu0 %v57
    %v97 = vpop.f32.mrf.mxu0
    %v98 = vadd.f32 0.0, %v97
    %99 = vmatmul.f32.gmra.mxu0 %v60
    %v100 = vpop.f32.mrf.mxu0
    %v101 = vadd.f32 0.0, %v100
    %102 = vmatmul.f32.gmra.mxu0 %v63
    %v103 = vpop.f32.mrf.mxu0
    %v104 = vadd.f32 0.0, %v103
    %105 = vmatmul.f32.gmra.mxu0 %v66
    %v106 = vpop.f32.mrf.mxu0
    %v107 = vadd.f32 0.0, %v106
    %108 = vmatmul.f32.gmra.mxu0 %v69
    %v109 = vpop.f32.mrf.mxu0
    %v110 = vadd.f32 0.0, %v109
    %111 = vmatmul.f32.gmra.mxu0 %v72
    %v112 = vpop.f32.mrf.mxu0
    %v113 = vadd.f32 0.0, %v112
    %114 = vmatmul.f32.gmra.mxu0 %v75
    %v115 = vpop.f32.mrf.mxu0
    %v116 = vadd.f32 0.0, %v115
    %117 = vmatmul.f32.gmra.mxu0 %v78
    %v118 = vpop.f32.mrf.mxu0
    %v119 = vadd.f32 0.0, %v118
    %120 = vdwg.mxu0
    %v121 = vld [vmem:[%s4] sm:$0xff]
    %v122 = vld [vmem:[%s4 + $0x8] sm:$0xff]
    %123 = vmatpush.msra.mxu0 0.0
    %124 = vmatpush.msra.mxu0 0.0
    %125 = vmatpush.msra.mxu0 0.0
    %126 = vmatpush.msra.mxu0 0.0
    %127 = vmatpush.msra.mxu0 0.0
    %128 = vmatpush.msra.mxu0 0.0
    %129 = vmatpush.msra.mxu0 0.0
    %130 = vmatpush.msra.mxu0 0.0
    %131 = vmatpush.msra.mxu0 0.0
    %132 = vmatpush.msra.mxu0 0.0
    %133 = vmatpush.msra.mxu0 0.0
    %134 = vmatpush.msra.mxu0 0.0
    %135 = vmatpush.msra.mxu0 0.0
    %136 = vmatpush.msra.mxu0 0.0
    %137 = vmatpush.msra.mxu0 %v122
    %138 = vmatpush.msra.mxu0 %v121
    %139 = vmatmul.f32.gmra.mxu0 %v57
    %v140 = vpop.f32.mrf.mxu0
    %v141 = vadd.f32 0.0, %v140
    %142 = vmatmul.f32.gmra.mxu0 %v60
    %v143 = vpop.f32.mrf.mxu0
    %v144 = vadd.f32 0.0, %v143
    %145 = vmatmul.f32.gmra.mxu0 %v63
    %v146 = vpop.f32.mrf.mxu0
    %v147 = vadd.f32 0.0, %v146
    %148 = vmatmul.f32.gmra.mxu0 %v66
    %v149 = vpop.f32.mrf.mxu0
    %v150 = vadd.f32 0.0, %v149
    %151 = vmatmul.f32.gmra.mxu0 %v69
    %v152 = vpop.f32.mrf.mxu0
    %v153 = vadd.f32 0.0, %v152
    %154 = vmatmul.f32.gmra.mxu0 %v72
    %v155 = vpop.f32.mrf.mxu0
    %v156 = vadd.f32 0.0, %v155
    %157 = vmatmul.f32.gmra.mxu0 %v75
    %v158 = vpop.f32.mrf.mxu0
    %v159 = vadd.f32 0.0, %v158
    %160 = vmatmul.f32.gmra.mxu0 %v78
    %v161 = vpop.f32.mrf.mxu0
    %v162 = vadd.f32 0.0, %v161
    %163 = vdwg.mxu0
    %v164 = vld [vmem:[%s1] sm:$0xff]
    %v165 = vld [vmem:[%s1 + $0x8] sm:$0xff]
    %v166 = vld [vmem:[%s1 + $0x10] sm:$0xff]
    %v167 = vld [vmem:[%s1 + $0x18] sm:$0xff]
    %v168 = vld [vmem:[%s1 + $0x20] sm:$0xff]
    %v169 = vld [vmem:[%s1 + $0x28] sm:$0xff]
    %v170 = vld [vmem:[%s1 + $0x30] sm:$0xff]
    %v171 = vld [vmem:[%s1 + $0x38] sm:$0xff]
    %vm172 = vcmask 523264
    %v174 = vsel %vm172, %v164, 0
    %v177 = vsel %vm172, %v165, 0
    %v180 = vsel %vm172, %v166, 0
    %v183 = vsel %vm172, %v167, 0
    %v186 = vsel %vm172, %v168, 0
    %v189 = vsel %vm172, %v169, 0
    %v192 = vsel %vm172, %v170, 0
    %v195 = vsel %vm172, %v171, 0
    %197 = vmatpush.msra.mxu0 0.0
    %198 = vmatpush.msra.mxu0 0.0
    %199 = vmatpush.msra.mxu0 0.0
    %200 = vmatpush.msra.mxu0 0.0
    %201 = vmatpush.msra.mxu0 0.0
    %202 = vmatpush.msra.mxu0 0.0
    %203 = vmatpush.msra.mxu0 0.0
    %204 = vmatpush.msra.mxu0 0.0
    %205 = vmatpush.msra.mxu0 %v119
    %206 = vmatpush.msra.mxu0 %v116
    %207 = vmatpush.msra.mxu0 %v113
    %208 = vmatpush.msra.mxu0 %v110
    %209 = vmatpush.msra.mxu0 %v107
    %210 = vmatpush.msra.mxu0 %v104
    %211 = vmatpush.msra.mxu0 %v101
    %212 = vmatpush.msra.mxu0 %v98
    %213 = vmatmul.f32.gmra.mxu0 %v174
    %v214 = vpop.f32.mrf.mxu0
    %v215 = vadd.f32 0.0, %v214
    %216 = vmatmul.f32.gmra.mxu0 %v177
    %v217 = vpop.f32.mrf.mxu0
    %v218 = vadd.f32 0.0, %v217
    %219 = vmatmul.f32.gmra.mxu0 %v180
    %v220 = vpop.f32.mrf.mxu0
    %v221 = vadd.f32 0.0, %v220
    %222 = vmatmul.f32.gmra.mxu0 %v183
    %v223 = vpop.f32.mrf.mxu0
    %v224 = vadd.f32 0.0, %v223
    %225 = vmatmul.f32.gmra.mxu0 %v186
    %v226 = vpop.f32.mrf.mxu0
    %v227 = vadd.f32 0.0, %v226
    %228 = vmatmul.f32.gmra.mxu0 %v189
    %v229 = vpop.f32.mrf.mxu0
    %v230 = vadd.f32 0.0, %v229
    %231 = vmatmul.f32.gmra.mxu0 %v192
    %v232 = vpop.f32.mrf.mxu0
    %v233 = vadd.f32 0.0, %v232
    %234 = vmatmul.f32.gmra.mxu0 %v195
    %v235 = vpop.f32.mrf.mxu0
    %v236 = vadd.f32 0.0, %v235
    %237 = vdwg.mxu0
    %v238 = vld [vmem:[#allocation2] sm:$0xff]
    %v239 = vld [vmem:[#allocation2 + $0x8] sm:$0xff]
    %v240 = vld [vmem:[#allocation2 + $0x10] sm:$0xff]
    %v241 = vld [vmem:[#allocation2 + $0x18] sm:$0xff]
    %v242 = vld [vmem:[#allocation2 + $0x20] sm:$0xff]
    %v243 = vld [vmem:[#allocation2 + $0x28] sm:$0xff]
    %v244 = vld [vmem:[#allocation2 + $0x30] sm:$0xff]
    %v245 = vld [vmem:[#allocation2 + $0x38] sm:$0xff]
    %v247 = vsel %vm172, %v238, 0
    %v250 = vsel %vm172, %v239, 0
    %v253 = vsel %vm172, %v240, 0
    %v256 = vsel %vm172, %v241, 0
    %v259 = vsel %vm172, %v242, 0
    %v262 = vsel %vm172, %v243, 0
    %v265 = vsel %vm172, %v244, 0
    %v268 = vsel %vm172, %v245, 0
    %270 = vmatpush.msra.mxu0 0.0
    %271 = vmatpush.msra.mxu0 0.0
    %272 = vmatpush.msra.mxu0 0.0
    %273 = vmatpush.msra.mxu0 0.0
    %274 = vmatpush.msra.mxu0 0.0
    %275 = vmatpush.msra.mxu0 0.0
    %276 = vmatpush.msra.mxu0 0.0
    %277 = vmatpush.msra.mxu0 0.0
    %278 = vmatpush.msra.mxu0 %v162
    %279 = vmatpush.msra.mxu0 %v159
    %280 = vmatpush.msra.mxu0 %v156
    %281 = vmatpush.msra.mxu0 %v153
    %282 = vmatpush.msra.mxu0 %v150
    %283 = vmatpush.msra.mxu0 %v147
    %284 = vmatpush.msra.mxu0 %v144
    %285 = vmatpush.msra.mxu0 %v141
    %286 = vmatmul.f32.gmra.mxu0 %v247
    %v287 = vpop.f32.mrf.mxu0
    %v288 = vadd.f32 0.0, %v287
    %289 = vmatmul.f32.gmra.mxu0 %v250
    %v290 = vpop.f32.mrf.mxu0
    %v291 = vadd.f32 0.0, %v290
    %292 = vmatmul.f32.gmra.mxu0 %v253
    %v293 = vpop.f32.mrf.mxu0
    %v294 = vadd.f32 0.0, %v293
    %295 = vmatmul.f32.gmra.mxu0 %v256
    %v296 = vpop.f32.mrf.mxu0
    %v297 = vadd.f32 0.0, %v296
    %298 = vmatmul.f32.gmra.mxu0 %v259
    %v299 = vpop.f32.mrf.mxu0
    %v300 = vadd.f32 0.0, %v299
    %301 = vmatmul.f32.gmra.mxu0 %v262
    %v302 = vpop.f32.mrf.mxu0
    %v303 = vadd.f32 0.0, %v302
    %304 = vmatmul.f32.gmra.mxu0 %v265
    %v305 = vpop.f32.mrf.mxu0
    %v306 = vadd.f32 0.0, %v305
    %307 = vmatmul.f32.gmra.mxu0 %v268
    %v308 = vpop.f32.mrf.mxu0
    %v309 = vadd.f32 0.0, %v308
    %310 = vdwg.mxu0
    %v311 = vld [vmem:[%s5] sm:$0xf]
    %v312 = vperm.slane %v311, 0
    %v313 = vmul.f32 %v215, %v312
    %v314 = vmul.f32 %v218, %v312
    %v315 = vmul.f32 %v221, %v312
    %v316 = vmul.f32 %v224, %v312
    %v317 = vmul.f32 %v227, %v312
    %v318 = vmul.f32 %v230, %v312
    %v319 = vmul.f32 %v233, %v312
    %v320 = vmul.f32 %v236, %v312
    %v321 = vperm.slane %v311, 1
    %v322 = vmul.f32 %v288, %v321
    %v323 = vmul.f32 %v291, %v321
    %v324 = vmul.f32 %v294, %v321
    %v325 = vmul.f32 %v297, %v321
    %v326 = vmul.f32 %v300, %v321
    %v327 = vmul.f32 %v303, %v321
    %v328 = vmul.f32 %v306, %v321
    %v329 = vmul.f32 %v309, %v321
    %v330 = vadd.f32 %v313, %v322
    %v331 = vadd.f32 %v314, %v323
    %v332 = vadd.f32 %v315, %v324
    %v333 = vadd.f32 %v316, %v325
    %v334 = vadd.f32 %v317, %v326
    %v335 = vadd.f32 %v318, %v327
    %v336 = vadd.f32 %v319, %v328
    %v337 = vadd.f32 %v320, %v329
    %vm338 = vcmask 261120
    %v339 = vsel %vm338, %v330, 0.0
    %340 = vadd.xlane.f32.xlu0 %v339
    %v341 = vpop.xlane.xlu0 %340
    %v342 = vsel %vm338, %v331, 0.0
    %343 = vadd.xlane.f32.xlu0 %v342
    %v344 = vpop.xlane.xlu0 %343
    %v345 = vsel %vm338, %v332, 0.0
    %346 = vadd.xlane.f32.xlu0 %v345
    %v347 = vpop.xlane.xlu0 %346
    %v348 = vsel %vm338, %v333, 0.0
    %349 = vadd.xlane.f32.xlu0 %v348
    %v350 = vpop.xlane.xlu0 %349
    %v351 = vsel %vm338, %v334, 0.0
    %352 = vadd.xlane.f32.xlu0 %v351
    %v353 = vpop.xlane.xlu0 %352
    %v354 = vsel %vm338, %v335, 0.0
    %355 = vadd.xlane.f32.xlu0 %v354
    %v356 = vpop.xlane.xlu0 %355
    %v357 = vsel %vm338, %v336, 0.0
    %358 = vadd.xlane.f32.xlu0 %v357
    %v359 = vpop.xlane.xlu0 %358
    %v360 = vsel %vm338, %v337, 0.0
    %361 = vadd.xlane.f32.xlu0 %v360
    %v362 = vpop.xlane.xlu0 %361
    %v363 = vperm.slane %v311, 2
    %v364 = vmul.f32 %v215, %v363
    %v365 = vmul.f32 %v218, %v363
    %v366 = vmul.f32 %v221, %v363
    %v367 = vmul.f32 %v224, %v363
    %v368 = vmul.f32 %v227, %v363
    %v369 = vmul.f32 %v230, %v363
    %v370 = vmul.f32 %v233, %v363
    %v371 = vmul.f32 %v236, %v363
    %v372 = vperm.slane %v311, 3
    %v373 = vmul.f32 %v288, %v372
    %v374 = vmul.f32 %v291, %v372
    %v375 = vmul.f32 %v294, %v372
    %v376 = vmul.f32 %v297, %v372
    %v377 = vmul.f32 %v300, %v372
    %v378 = vmul.f32 %v303, %v372
    %v379 = vmul.f32 %v306, %v372
    %v380 = vmul.f32 %v309, %v372
    %v381 = vadd.f32 %v364, %v373
    %v382 = vadd.f32 %v365, %v374
    %v383 = vadd.f32 %v366, %v375
    %v384 = vadd.f32 %v367, %v376
    %v385 = vadd.f32 %v368, %v377
    %v386 = vadd.f32 %v369, %v378
    %v387 = vadd.f32 %v370, %v379
    %v388 = vadd.f32 %v371, %v380
    %v389 = vsel %vm338, %v381, 0.0
    %390 = vadd.xlane.f32.xlu0 %v389
    %v391 = vpop.xlane.xlu0 %390
    %v392 = vsel %vm338, %v382, 0.0
    %393 = vadd.xlane.f32.xlu0 %v392
    %v394 = vpop.xlane.xlu0 %393
    %v395 = vsel %vm338, %v383, 0.0
    %396 = vadd.xlane.f32.xlu0 %v395
    %v397 = vpop.xlane.xlu0 %396
    %v398 = vsel %vm338, %v384, 0.0
    %399 = vadd.xlane.f32.xlu0 %v398
    %v400 = vpop.xlane.xlu0 %399
    %v401 = vsel %vm338, %v385, 0.0
    %402 = vadd.xlane.f32.xlu0 %v401
    %v403 = vpop.xlane.xlu0 %402
    %v404 = vsel %vm338, %v386, 0.0
    %405 = vadd.xlane.f32.xlu0 %v404
    %v406 = vpop.xlane.xlu0 %405
    %v407 = vsel %vm338, %v387, 0.0
    %408 = vadd.xlane.f32.xlu0 %v407
    %v409 = vpop.xlane.xlu0 %408
    %v410 = vsel %vm338, %v388, 0.0
    %411 = vadd.xlane.f32.xlu0 %v410
    %v412 = vpop.xlane.xlu0 %411
    %v413 = vmax.f32 %v341, %v391
    %v414 = vmax.f32 %v344, %v394
    %v415 = vmax.f32 %v347, %v397
    %v416 = vmax.f32 %v350, %v400
    %v417 = vmax.f32 %v353, %v403
    %v418 = vmax.f32 %v356, %v406
    %v419 = vmax.f32 %v359, %v409
    %v420 = vmax.f32 %v362, %v412
    %v421 = vsub.f32 %v341, %v413
    %v422 = vsub.f32 %v344, %v414
    %v423 = vsub.f32 %v347, %v415
    %v424 = vsub.f32 %v350, %v416
    %v425 = vsub.f32 %v353, %v417
    %v426 = vsub.f32 %v356, %v418
    %v427 = vsub.f32 %v359, %v419
    %v428 = vsub.f32 %v362, %v420
    %v429 = vmul.f32 %v421, 1.442695
    %v430 = vpow.pop %v429
    %v431 = vmul.f32 %v422, 1.442695
    %v432 = vpow.pop %v431
    %v433 = vmul.f32 %v423, 1.442695
    %v434 = vpow.pop %v433
    %v435 = vmul.f32 %v424, 1.442695
    %v436 = vpow.pop %v435
    %v437 = vmul.f32 %v425, 1.442695
    %v438 = vpow.pop %v437
    %v439 = vmul.f32 %v426, 1.442695
    %v440 = vpow.pop %v439
    %v441 = vmul.f32 %v427, 1.442695
    %v442 = vpow.pop %v441
    %v443 = vmul.f32 %v428, 1.442695
    %v444 = vpow.pop %v443
    %v445 = vsub.f32 %v391, %v413
    %v446 = vsub.f32 %v394, %v414
    %v447 = vsub.f32 %v397, %v415
    %v448 = vsub.f32 %v400, %v416
    %v449 = vsub.f32 %v403, %v417
    %v450 = vsub.f32 %v406, %v418
    %v451 = vsub.f32 %v409, %v419
    %v452 = vsub.f32 %v412, %v420
    %v453 = vmul.f32 %v445, 1.442695
    %v454 = vpow.pop %v453
    %v455 = vmul.f32 %v446, 1.442695
    %v456 = vpow.pop %v455
    %v457 = vmul.f32 %v447, 1.442695
    %v458 = vpow.pop %v457
    %v459 = vmul.f32 %v448, 1.442695
    %v460 = vpow.pop %v459
    %v461 = vmul.f32 %v449, 1.442695
    %v462 = vpow.pop %v461
    %v463 = vmul.f32 %v450, 1.442695
    %v464 = vpow.pop %v463
    %v465 = vmul.f32 %v451, 1.442695
    %v466 = vpow.pop %v465
    %v467 = vmul.f32 %v452, 1.442695
    %v468 = vpow.pop %v467
    %v469 = vadd.f32 %v430, %v454
    %v470 = vadd.f32 %v432, %v456
    %v471 = vadd.f32 %v434, %v458
    %v472 = vadd.f32 %v436, %v460
    %v473 = vadd.f32 %v438, %v462
    %v474 = vadd.f32 %v440, %v464
    %v475 = vadd.f32 %v442, %v466
    %v476 = vadd.f32 %v444, %v468
    %v477 = vrcp.pop %v469
    %v478 = vmul.f32 %v469, %v477
    %v479 = vsub.f32 1.0, %v478
    %v480 = vmul.f32 %v477, %v479
    %v481 = vadd.f32 %v477, %v480
    %vm482 = vweird.f32 %v469
    %vm483 = vweird.f32 %v477
    %vm484 = vmor %vm482, %vm483
    %v485 = vsel %vm484, %v477, %v481
    %v486 = vand.u32 2147483647, %v469
    %vm487 = vcmp.eq.f32.partialorder %v486, 8.507059e+37
    %v488 = vand.u32 %v469, 2147483648
    %v489 = vor.u32 1.1754944e-38, %v488
    %v490 = vsel %vm487, %v489, %v485
    %v491 = vmul.f32 1.0, %v490
    %v492 = vrcp.pop %v470
    %v493 = vmul.f32 %v470, %v492
    %v494 = vsub.f32 1.0, %v493
    %v495 = vmul.f32 %v492, %v494
    %v496 = vadd.f32 %v492, %v495
    %vm497 = vweird.f32 %v470
    %vm498 = vweird.f32 %v492
    %vm499 = vmor %vm497, %vm498
    %v500 = vsel %vm499, %v492, %v496
    %v501 = vand.u32 2147483647, %v470
    %vm502 = vcmp.eq.f32.partialorder %v501, 8.507059e+37
    %v503 = vand.u32 %v470, 2147483648
    %v504 = vor.u32 1.1754944e-38, %v503
    %v505 = vsel %vm502, %v504, %v500
    %v506 = vmul.f32 1.0, %v505
    %v507 = vrcp.pop %v471
    %v508 = vmul.f32 %v471, %v507
    %v509 = vsub.f32 1.0, %v508
    %v510 = vmul.f32 %v507, %v509
    %v511 = vadd.f32 %v507, %v510
    %vm512 = vweird.f32 %v471
    %vm513 = vweird.f32 %v507
    %vm514 = vmor %vm512, %vm513
    %v515 = vsel %vm514, %v507, %v511
    %v516 = vand.u32 2147483647, %v471
    %vm517 = vcmp.eq.f32.partialorder %v516, 8.507059e+37
    %v518 = vand.u32 %v471, 2147483648
    %v519 = vor.u32 1.1754944e-38, %v518
    %v520 = vsel %vm517, %v519, %v515
    %v521 = vmul.f32 1.0, %v520
    %v522 = vrcp.pop %v472
    %v523 = vmul.f32 %v472, %v522
    %v524 = vsub.f32 1.0, %v523
    %v525 = vmul.f32 %v522, %v524
    %v526 = vadd.f32 %v522, %v525
    %vm527 = vweird.f32 %v472
    %vm528 = vweird.f32 %v522
    %vm529 = vmor %vm527, %vm528
    %v530 = vsel %vm529, %v522, %v526
    %v531 = vand.u32 2147483647, %v472
    %vm532 = vcmp.eq.f32.partialorder %v531, 8.507059e+37
    %v533 = vand.u32 %v472, 2147483648
    %v534 = vor.u32 1.1754944e-38, %v533
    %v535 = vsel %vm532, %v534, %v530
    %v536 = vmul.f32 1.0, %v535
    %v537 = vrcp.pop %v473
    %v538 = vmul.f32 %v473, %v537
    %v539 = vsub.f32 1.0, %v538
    %v540 = vmul.f32 %v537, %v539
    %v541 = vadd.f32 %v537, %v540
    %vm542 = vweird.f32 %v473
    %vm543 = vweird.f32 %v537
    %vm544 = vmor %vm542, %vm543
    %v545 = vsel %vm544, %v537, %v541
    %v546 = vand.u32 2147483647, %v473
    %vm547 = vcmp.eq.f32.partialorder %v546, 8.507059e+37
    %v548 = vand.u32 %v473, 2147483648
    %v549 = vor.u32 1.1754944e-38, %v548
    %v550 = vsel %vm547, %v549, %v545
    %v551 = vmul.f32 1.0, %v550
    %v552 = vrcp.pop %v474
    %v553 = vmul.f32 %v474, %v552
    %v554 = vsub.f32 1.0, %v553
    %v555 = vmul.f32 %v552, %v554
    %v556 = vadd.f32 %v552, %v555
    %vm557 = vweird.f32 %v474
    %vm558 = vweird.f32 %v552
    %vm559 = vmor %vm557, %vm558
    %v560 = vsel %vm559, %v552, %v556
    %v561 = vand.u32 2147483647, %v474
    %vm562 = vcmp.eq.f32.partialorder %v561, 8.507059e+37
    %v563 = vand.u32 %v474, 2147483648
    %v564 = vor.u32 1.1754944e-38, %v563
    %v565 = vsel %vm562, %v564, %v560
    %v566 = vmul.f32 1.0, %v565
    %v567 = vrcp.pop %v475
    %v568 = vmul.f32 %v475, %v567
    %v569 = vsub.f32 1.0, %v568
    %v570 = vmul.f32 %v567, %v569
    %v571 = vadd.f32 %v567, %v570
    %vm572 = vweird.f32 %v475
    %vm573 = vweird.f32 %v567
    %vm574 = vmor %vm572, %vm573
    %v575 = vsel %vm574, %v567, %v571
    %v576 = vand.u32 2147483647, %v475
    %vm577 = vcmp.eq.f32.partialorder %v576, 8.507059e+37
    %v578 = vand.u32 %v475, 2147483648
    %v579 = vor.u32 1.1754944e-38, %v578
    %v580 = vsel %vm577, %v579, %v575
    %v581 = vmul.f32 1.0, %v580
    %v582 = vrcp.pop %v476
    %v583 = vmul.f32 %v476, %v582
    %v584 = vsub.f32 1.0, %v583
    %v585 = vmul.f32 %v582, %v584
    %v586 = vadd.f32 %v582, %v585
    %vm587 = vweird.f32 %v476
    %vm588 = vweird.f32 %v582
    %vm589 = vmor %vm587, %vm588
    %v590 = vsel %vm589, %v582, %v586
    %v591 = vand.u32 2147483647, %v476
    %vm592 = vcmp.eq.f32.partialorder %v591, 8.507059e+37
    %v593 = vand.u32 %v476, 2147483648
    %v594 = vor.u32 1.1754944e-38, %v593
    %v595 = vsel %vm592, %v594, %v590
    %v596 = vmul.f32 1.0, %v595
    %v597 = vmul.f32 %v430, %v491
    %v598 = vmul.f32 %v432, %v506
    %v599 = vmul.f32 %v434, %v521
    %v600 = vmul.f32 %v436, %v536
    %v601 = vmul.f32 %v438, %v551
    %v602 = vmul.f32 %v440, %v566
    %v603 = vmul.f32 %v442, %v581
    %v604 = vmul.f32 %v444, %v596
    %v605 = vmul.f32 %v454, %v491
    %v606 = vmul.f32 %v456, %v506
    %v607 = vmul.f32 %v458, %v521
    %v608 = vmul.f32 %v460, %v536
    %v609 = vmul.f32 %v462, %v551
    %v610 = vmul.f32 %v464, %v566
    %v611 = vmul.f32 %v466, %v581
    %v612 = vmul.f32 %v468, %v596
    %v613 = vmul.f32 %v597, %v215
    %v614 = vmul.f32 %v598, %v218
    %v615 = vmul.f32 %v599, %v221
    %v616 = vmul.f32 %v600, %v224
    %v617 = vmul.f32 %v601, %v227
    %v618 = vmul.f32 %v602, %v230
    %v619 = vmul.f32 %v603, %v233
    %v620 = vmul.f32 %v604, %v236
    %v621 = vmul.f32 %v605, %v288
    %v622 = vmul.f32 %v606, %v291
    %v623 = vmul.f32 %v607, %v294
    %v624 = vmul.f32 %v608, %v297
    %v625 = vmul.f32 %v609, %v300
    %v626 = vmul.f32 %v610, %v303
    %v627 = vmul.f32 %v611, %v306
    %v628 = vmul.f32 %v612, %v309
    %v629 = vadd.f32 %v613, %v621
    %v630 = vadd.f32 %v614, %v622
    %v631 = vadd.f32 %v615, %v623
    %v632 = vadd.f32 %v616, %v624
    %v633 = vadd.f32 %v617, %v625
    %v634 = vadd.f32 %v618, %v626
    %v635 = vadd.f32 %v619, %v627
    %v636 = vadd.f32 %v620, %v628
    %v637 = vmax.f32 %v629, 0.0
    %v638 = vmax.f32 %v630, 0.0
    %v639 = vmax.f32 %v631, 0.0
    %v640 = vmax.f32 %v632, 0.0
    %v641 = vmax.f32 %v633, 0.0
    %v642 = vmax.f32 %v634, 0.0
    %v643 = vmax.f32 %v635, 0.0
    %v644 = vmax.f32 %v636, 0.0
    %v645 = vld [vmem:[%s6] sm:$0xff]
    %v646 = vld [vmem:[%s6 + $0x8] sm:$0xff]
    %v647 = vld [vmem:[%s6 + $0x10] sm:$0xff]
    %v648 = vld [vmem:[%s6 + $0x18] sm:$0xff]
    %v649 = vld [vmem:[%s7] sm:$0x1]
    %v651 = vperm.slane %v649, 0
    %v654 = vsel %vm338, %v637, 0
    %v657 = vsel %vm338, %v638, 0
    %v660 = vsel %vm338, %v639, 0
    %v663 = vsel %vm338, %v640, 0
    %v666 = vsel %vm338, %v641, 0
    %v669 = vsel %vm338, %v642, 0
    %v672 = vsel %vm338, %v643, 0
    %v675 = vsel %vm338, %v644, 0
    %677 = vmatpush.msra.mxu0 0.0
    %678 = vmatpush.msra.mxu0 0.0
    %679 = vmatpush.msra.mxu0 0.0
    %680 = vmatpush.msra.mxu0 0.0
    %681 = vmatpush.msra.mxu0 0.0
    %682 = vmatpush.msra.mxu0 0.0
    %683 = vmatpush.msra.mxu0 0.0
    %684 = vmatpush.msra.mxu0 0.0
    %685 = vmatpush.msra.mxu0 0.0
    %686 = vmatpush.msra.mxu0 0.0
    %687 = vmatpush.msra.mxu0 0.0
    %688 = vmatpush.msra.mxu0 0.0
    %689 = vmatpush.msra.mxu0 %v648
    %690 = vmatpush.msra.mxu0 %v647
    %691 = vmatpush.msra.mxu0 %v646
    %692 = vmatpush.msra.mxu0 %v645
    %693 = vmatmul.f32.gmra.mxu0 %v654
    %v694 = vpop.f32.mrf.mxu0
    %v695 = vadd.f32 %v651, %v694
    %696 = vmatmul.f32.gmra.mxu0 %v657
    %v697 = vpop.f32.mrf.mxu0
    %v698 = vadd.f32 %v651, %v697
    %699 = vmatmul.f32.gmra.mxu0 %v660
    %v700 = vpop.f32.mrf.mxu0
    %v701 = vadd.f32 %v651, %v700
    %702 = vmatmul.f32.gmra.mxu0 %v663
    %v703 = vpop.f32.mrf.mxu0
    %v704 = vadd.f32 %v651, %v703
    %705 = vmatmul.f32.gmra.mxu0 %v666
    %v706 = vpop.f32.mrf.mxu0
    %v707 = vadd.f32 %v651, %v706
    %708 = vmatmul.f32.gmra.mxu0 %v669
    %v709 = vpop.f32.mrf.mxu0
    %v710 = vadd.f32 %v651, %v709
    %711 = vmatmul.f32.gmra.mxu0 %v672
    %v712 = vpop.f32.mrf.mxu0
    %v713 = vadd.f32 %v651, %v712
    %714 = vmatmul.f32.gmra.mxu0 %v675
    %v715 = vpop.f32.mrf.mxu0
    %v716 = vadd.f32 %v651, %v715
    %717 = vdwg.mxu0
    %718 = vst.msk [vmem:[%s8] sm:$0xff] %vm55, %v695
    %719 = vst.msk [vmem:[%s8 + $0x8] sm:$0xff] %vm55, %v698
    %720 = vst.msk [vmem:[%s8 + $0x10] sm:$0xff] %vm55, %v701
    %721 = vst.msk [vmem:[%s8 + $0x18] sm:$0xff] %vm55, %v704
    %722 = vst.msk [vmem:[%s8 + $0x20] sm:$0xff] %vm55, %v707
    %723 = vst.msk [vmem:[%s8 + $0x28] sm:$0xff] %vm55, %v710
    %724 = vst.msk [vmem:[%s8 + $0x30] sm:$0xff] %vm55, %v713
    %725 = vst.msk [vmem:[%s8 + $0x38] sm:$0xff] %vm55, %v716
    // Predicated region
    $region38: #{multiplex_gnnp_forward.1} parent=1 // pred_check
      _
    $region39: #{multiplex_gnnp_forward.1} parent=1 // pred_check_branch
      %727 = sbr.rel (0) target = $region41
    $region40: #{multiplex_gnnp_forward.1} parent=1 // pred_region
      _
    $region41: #{multiplex_gnnp_forward.1} parent=1 // pred_fallthru
      _
    // Predicated region
    $region42: #{multiplex_gnnp_forward.1} parent=1 // pred_check
      _
    $region43: #{multiplex_gnnp_forward.1} parent=1 // pred_check_branch
      %729 = sbr.rel (0) target = $region45
    $region44: #{multiplex_gnnp_forward.1} parent=1 // pred_region
      _
    $region45: #{multiplex_gnnp_forward.1} parent=1 // pred_fallthru
      _
    %730 = vsyncpa [#allocation3], 1

</llo_original>
